<compile_context>
chip_gen: v7x
topology: tpu7x:2x2x1
jax: 0.10.0
libtpu: 0.0.40
codegen_flags: <defaults>
</compile_context>

<pallas_src>
import functools

import jax
import jax.numpy as jnp
from jax import lax
from jax.experimental import pallas as pl
from jax.experimental.pallas import tpu as pltpu


def _round_up(x, m):
    return ((x + m - 1) // m) * m


def _tensorcores_per_chip():
    """Best-effort TC-per-chip detection: v5e/v6e -> 1, v7x -> 2.

    Falls back to 1 (a size-1 shard axis is a no-op, so this is always safe).
    """
    try:
        kind = jax.devices()[0].device_kind.lower()
    except Exception:
        return 1
    return 2 if "v7" in kind else 1


def _id_latent_loss_kernel(a_ref, b_ref, out_ref, *, tile_batch, total_batch):
    """Grid = (shard, step); step is the reduction ("arbitrary") axis.

    out_ref is a (1, 1) f32 block whose block index is constant along the step
    axis, so it stays VMEM-resident across the whole shard and serves as the
    accumulator. It is written back to HBM once after the shard's last step.
    """
    s = pl.program_id(0)
    k = pl.program_id(1)
    num_shards = pl.num_programs(0)

    @pl.when(k == 0)
    def _():
        out_ref[...] = jnp.zeros_like(out_ref)

    # Unclamped interleaved tile index, used only for row-validity masking.
    # The index_map clamps the actual DMA so spill-over steps re-read an
    # in-bounds tile; the select below zeroes their contribution.  Keep this a
    # select (jnp.where) — a multiply-by-mask would propagate NaN/inf from
    # uninitialized padded VMEM rows.
    tile_idx = k * num_shards + s
    row_start = tile_idx * tile_batch
    local_row = lax.broadcasted_iota(jnp.int32, (tile_batch, 1), 0)
    valid = (row_start + local_row) < total_batch              # (tb, 1) bool

    # diff -> squared sum over the feature (lane) axis -> per-row L2 norm.
    diff = a_ref[...].astype(jnp.float32) - b_ref[...].astype(jnp.float32)
    sumsq = jnp.sum(diff * diff, axis=1, keepdims=True)        # (tb, 1)
    norms = jnp.where(valid, jnp.sqrt(sumsq), 0.0)             # mask padding

    # NOTE: a single f32 running sum per shard is plenty for realistic batch
    # sizes; for B in the millions, widen the accumulator or add shards.
    out_ref[...] += jnp.sum(norms).reshape(1, 1)


def id_latent_loss(latent_a, latent_b, *, tile_batch=None, num_shards=None,
                   vmem_budget_bytes=16 * 1024 * 1024,
                   max_input_tile_bytes=2 * 1024 * 1024):
    """Pallas implementation of IDLatentLoss.forward.

    latent_a, latent_b: (B, D) arrays (f32 or bf16 — prefer bf16: it halves
    HBM traffic, the only cost of this kernel, and the math is still done in
    f32). Returns a scalar f32 loss.
    """
    assert latent_a.shape == latent_b.shape
    B, D = latent_a.shape
    itemsize = jnp.dtype(latent_a.dtype).itemsize

    if tile_batch is None:
        # Per-row VMEM cost: 2 inputs x 2 pipeline buffers in the input dtype
        # plus ~3 f32 temporaries (upcast a/b, diff, diff^2) live in the body.
        per_row_pipeline = 2 * 2 * D * itemsize
        per_row_scratch = 3 * D * 4
        tile_batch = max(8, vmem_budget_bytes // (per_row_pipeline + per_row_scratch))
        # Cap each input tile at ~2 MiB: streaming kernels hit ~85% of HBM
        # roofline already there; bigger tiles only add VMEM pressure.
        tile_batch = min(tile_batch, max(8, max_input_tile_bytes // (D * itemsize)))
        tile_batch = min(tile_batch, 4096)
    tile_batch = max(8, (tile_batch // 8) * 8)        # sublane multiple
    tile_batch = min(tile_batch, _round_up(B, 8))     # don't exceed the data

    tiles_total = pl.cdiv(B, tile_batch)

    if num_shards is None:
        # 1 shard on single-TC chips (v5e/v6e); 2 on v7x so both TensorCores
        # share the HBM stream.
        num_shards = _tensorcores_per_chip()
    num_shards = max(1, min(num_shards, tiles_total))
    # With only a handful of tiles, avoid proportionally expensive clamped
    # re-reads by dropping to a shard count that divides tiles_total.
    if tiles_total % num_shards != 0 and tiles_total < 4 * num_shards:
        while tiles_total % num_shards:
            num_shards -= 1
    steps_per_shard = pl.cdiv(tiles_total, num_shards)

    def in_index_map(s, k):
        # Tiles interleaved across shards; clamp keeps spill-over steps in
        # bounds (their rows are masked out in the kernel).
        t = jnp.minimum(k * num_shards + s, tiles_total - 1)
        return (t, 0)

    kernel = functools.partial(
        _id_latent_loss_kernel,
        tile_batch=tile_batch,
        total_batch=B,
    )

    partials = pl.pallas_call(
        kernel,
        out_shape=jax.ShapeDtypeStruct((num_shards, 1), jnp.float32),
        grid_spec=pltpu.PrefetchScalarGridSpec(
            num_scalar_prefetch=0,
            grid=(num_shards, steps_per_shard),
            in_specs=[
                pl.BlockSpec((tile_batch, D), in_index_map),
                pl.BlockSpec((tile_batch, D), in_index_map),
            ],
            out_specs=pl.BlockSpec((1, 1), lambda s, k: (s, 0)),
        ),
        compiler_params=pltpu.CompilerParams(
            # Shard axis parallel (megacore split on v7x), reduction axis last.
            # TODO(synk): on v7x, confirm via xprof that both TCs stream; if
            # only one TC is busy, switch the shard axis to pltpu.CORE_PARALLEL.
            dimension_semantics=("parallel", "arbitrary"),
            vmem_limit_bytes=32 * 1024 * 1024,
        ),
    )(latent_a, latent_b)

    # Combine per-shard partial sums and take the mean over the batch.
    return jnp.sum(partials) / jnp.float32(B)


if __name__ == "__main__":
    key = jax.random.PRNGKey(0)
    ka, kb = jax.random.split(key)

    B, D = 16, 256  # small latent batch; feature dim on the lane axis
    latent_a = jax.random.normal(ka, (B, D), dtype=jnp.float32)
    latent_b = jax.random.normal(kb, (B, D), dtype=jnp.float32)

    loss = jax.block_until_ready(id_latent_loss(latent_a, latent_b))

    # pure-JAX reference check (same semantics as the PyTorch module)
    ref = jnp.mean(jnp.linalg.norm(latent_a - latent_b, ord=2, axis=1))
    assert jnp.allclose(loss, ref, rtol=1e-5, atol=1e-5), (loss, ref)

    print("KERNEL_OK")
</pallas_src>

<mosaic_0001>
module attributes {stable_mosaic.version = 11 : i64} {
  func.func @_id_latent_loss_kernel(%arg0: i32, %arg1: i32, %arg2: memref<16x256xf32, #tpu.memory_space<vmem>>, %arg3: memref<16x256xf32, #tpu.memory_space<vmem>>, %arg4: memref<1x1xf32, #tpu.memory_space<vmem>>) attributes {dimension_semantics = [#tpu.dimension_semantics<parallel>, #tpu.dimension_semantics<arbitrary>], iteration_bounds = array<i64: 1, 1>, scalar_prefetch = 0 : i64, scratch_operands = 0 : i64, tpu.core_type = #tpu.core_type<tc>, window_params = [{transform_indices = @transform_0, window_bounds = array<i64: 16, 256>}, {transform_indices = @transform_1, window_bounds = array<i64: 16, 256>}, {transform_indices = @transform_2, window_bounds = array<i64: 1, 1>}]} {
    %c0_i32 = arith.constant 0 : i32
    %0 = arith.cmpi eq, %arg1, %c0_i32 : i32
    %1 = arith.extui %0 : i1 to i32
    %c0_i32_0 = arith.constant 0 : i32
    %2 = arith.cmpi ne, %1, %c0_i32_0 : i32
    scf.if %2 {
      %cst_11 = arith.constant 0.000000e+00 : f32
      %28 = vector.broadcast %cst_11 : f32 to vector<1x1xf32>
      %c0_12 = arith.constant 0 : index
      %c0_13 = arith.constant 0 : index
      %29 = vector.load %arg4[%c0_12, %c0_13] : memref<1x1xf32, #tpu.memory_space<vmem>>, vector<1x1xf32>
      tpu.vector_store %arg4[%c0_12, %c0_13], %28 {strides = array<i32>} : memref<1x1xf32, #tpu.memory_space<vmem>>, vector<1x1xf32>,
    } else {
    }
    %c1_i32 = arith.constant 1 : i32
    %3 = arith.muli %arg1, %c1_i32 : i32
    %4 = arith.addi %3, %arg0 : i32
    %c16_i32 = arith.constant 16 : i32
    %5 = arith.muli %4, %c16_i32 : i32
    %6 = tpu.iota {dimensions = array<i32: 0>} : vector<16x1xi32>
    %7 = vector.broadcast %5 : i32 to vector<16x1xi32>
    %8 = arith.addi %7, %6 : vector<16x1xi32>
    %c16_i32_1 = arith.constant 16 : i32
    %9 = vector.broadcast %c16_i32_1 : i32 to vector<16x1xi32>
    %10 = arith.cmpi slt, %8, %9 : vector<16x1xi32>
    %c0 = arith.constant 0 : index
    %c0_2 = arith.constant 0 : index
    %11 = vector.load %arg2[%c0, %c0_2] : memref<16x256xf32, #tpu.memory_space<vmem>>, vector<16x256xf32>
    %c0_3 = arith.constant 0 : index
    %c0_4 = arith.constant 0 : index
    %12 = vector.load %arg3[%c0_3, %c0_4] : memref<16x256xf32, #tpu.memory_space<vmem>>, vector<16x256xf32>
    %13 = arith.subf %11, %12 : vector<16x256xf32>
    %14 = arith.mulf %13, %13 : vector<16x256xf32>
    %cst = arith.constant dense<0.000000e+00> : vector<16xf32>
    %15 = vector.multi_reduction <add>, %14, %cst [1] : vector<16x256xf32> to vector<16xf32>
    %16 = vector.shape_cast %15 : vector<16xf32> to vector<16x1xf32>
    %17 = math.sqrt %16 : vector<16x1xf32>
    %cst_5 = arith.constant 0.000000e+00 : f32
    %18 = vector.broadcast %cst_5 : f32 to vector<16x1xf32>
    %19 = arith.select %10, %17, %18 : vector<16x1xi1>, vector<16x1xf32>
    %c0_6 = arith.constant 0 : index
    %c0_7 = arith.constant 0 : index
    %20 = vector.load %arg4[%c0_6, %c0_7] : memref<1x1xf32, #tpu.memory_space<vmem>>, vector<1x1xf32>
    %21 = vector.shape_cast %19 : vector<16x1xf32> to vector<1x16x1xf32>
    %cst_8 = arith.constant dense<0.000000e+00> : vector<1xf32>
    %22 = vector.multi_reduction <add>, %21, %cst_8 [1, 2] : vector<1x16x1xf32> to vector<1xf32>
    %23 = vector.shape_cast %22 : vector<1xf32> to vector<1x1x1xf32>
    %24 = vector.extract %23[0, 0, 0] : f32 from vector<1x1x1xf32>
    %25 = vector.broadcast %24 : f32 to vector<1x1xf32>
    %26 = arith.addf %20, %25 : vector<1x1xf32>
    %c0_9 = arith.constant 0 : index
    %c0_10 = arith.constant 0 : index
    %27 = vector.load %arg4[%c0_9, %c0_10] : memref<1x1xf32, #tpu.memory_space<vmem>>, vector<1x1xf32>
    tpu.vector_store %arg4[%c0_9, %c0_10], %26 {strides = array<i32>} : memref<1x1xf32, #tpu.memory_space<vmem>>, vector<1x1xf32>,
    return
  }
  func.func @transform_0(%arg0: i32, %arg1: i32) -> (i32, i32) {
    %c1_i32 = arith.constant 1 : i32
    %0 = arith.muli %arg1, %c1_i32 : i32
    %1 = arith.addi %0, %arg0 : i32
    %c0_i32 = arith.constant 0 : i32
    %2 = arith.minsi %1, %c0_i32 : i32
    %c0_i32_0 = arith.constant 0 : i32
    %c0_i32_1 = arith.constant 0 : i32
    return %2, %c0_i32_0 : i32, i32
  }
  func.func @transform_1(%arg0: i32, %arg1: i32) -> (i32, i32) {
    %c1_i32 = arith.constant 1 : i32
    %0 = arith.muli %arg1, %c1_i32 : i32
    %1 = arith.addi %0, %arg0 : i32
    %c0_i32 = arith.constant 0 : i32
    %2 = arith.minsi %1, %c0_i32 : i32
    %c0_i32_0 = arith.constant 0 : i32
    %c0_i32_1 = arith.constant 0 : i32
    return %2, %c0_i32_0 : i32, i32
  }
  func.func @transform_2(%arg0: i32, %arg1: i32) -> (i32, i32) {
    %c0_i32 = arith.constant 0 : i32
    %c0_i32_0 = arith.constant 0 : i32
    return %arg0, %c0_i32 : i32, i32
  }
}

</mosaic_0001>

<llo_original>
// kernel: tpu_custom_call.1
$region0: #{tpu_custom_call.1}
  #allocation0 [shape = 'u32[]', space=smem, size = 0x4, offset = 0x4, fixed_abs, tag = 'smem constant byte address 0x4 - core index']
  #allocation1 [shape = 'u32[144,128]{1,0:T(1,128)}', space=vmem, size = 0x12000, scoped, tag = 'internal scratch']
  %s0 = inlined_call_operand.hbm [shape: f32[16,256], index: 0, kind: input, shape index: {}]
  %s1 = inlined_call_operand.hbm [shape: f32[16,256], index: 1, kind: input, shape index: {}]
  %s2 = inlined_call_operand.hbm [shape: f32[1,1], index: 2, kind: output, shape index: {}]
  %s3 = sld [smem:[#allocation0]]
  $region30: #{tpu_custom_call.1} parent=0
    _
  %s5 = ssub.s32 1, %s3
  %s6 = scalar_select 0, %s5, %s3
  $region1: #{tpu_custom_call.1} parent=0
    #allocation2 [shape = 'u8[16384]{0}', space=vmem, size = 0x4000, scoped, tag = 'input window, operand 0, single buffered']
    #allocation3 [shape = 's32[1]{0}', space=sflag, size = 0x4, scoped, tag = 'scoped memory for tpu_custom_call.1']
    #allocation4 [shape = 's32[1]{0}', space=sflag, size = 0x4, scoped, tag = 'scoped memory for tpu_custom_call.1']
    #allocation5 [shape = 'u8[16384]{0}', space=vmem, size = 0x4000, scoped, tag = 'input window, operand 1, single buffered']
    #allocation6 [shape = 's32[1]{0}', space=sflag, size = 0x4, scoped, tag = 'scoped memory for tpu_custom_call.1']
    #allocation7 [shape = 'u8[512]{0}', space=vmem, size = 0x400, scoped, tag = 'output window, operand 0, single buffered']
    %7 = vsyncpa [#allocation3], 0
    %8 = vsyncpa [#allocation6], 0
    %9 = vsyncpa [#allocation4], 0
    // Predicated region
    $region2: #{tpu_custom_call.1} parent=1 // pred_check
      _
    $region3: #{tpu_custom_call.1} parent=1 // pred_check_branch
      %11 = sbr.rel (0) target = $region5
    $region4: #{tpu_custom_call.1} parent=1 // pred_region
      %s12 = sadd.s32 0, 0
      %p13 = scmp.lt.s32.totalorder %s12, 0
      %s14 = scalar_select %p13, %s12, 0
      %s15 = smul.u32 2, %s14
      %s17 = ssub.s32 512, 512
      %18 = vsyncadd [#allocation3], %s17
      %s19 = smul.addr %s15, 2
      %s20 = smul.addr %s19, 128
      %s21 = scalar_lea.hbm %s0, %s20
      %s22 = sshll.u32 [#allocation2], 4
      %s23 = int_to_ptr.vmem [resolvable:$true] %s22
      %28 = dma.hbm_to_vmem [thread:$0]  %s21, 512, %s23, [#allocation3], 256, 256, 16
    $region5: #{tpu_custom_call.1} parent=1 // pred_fallthru
      _
    // Predicated region
    $region6: #{tpu_custom_call.1} parent=1 // pred_check
      _
    $region7: #{tpu_custom_call.1} parent=1 // pred_check_branch
      %30 = sbr.rel (0) target = $region9
    $region8: #{tpu_custom_call.1} parent=1 // pred_region
      %s31 = sadd.s32 0, 0
      %p32 = scmp.lt.s32.totalorder %s31, 0
      %s33 = scalar_select %p32, %s31, 0
      %s34 = smul.u32 2, %s33
      %s36 = ssub.s32 512, 512
      %37 = vsyncadd [#allocation6], %s36
      %s38 = smul.addr %s34, 2
      %s39 = smul.addr %s38, 128
      %s40 = scalar_lea.hbm %s1, %s39
      %s41 = sshll.u32 [#allocation5], 4
      %s42 = int_to_ptr.vmem [resolvable:$true] %s41
      %47 = dma.hbm_to_vmem [thread:$0]  %s40, 512, %s42, [#allocation6], 256, 256, 16
    $region9: #{tpu_custom_call.1} parent=1 // pred_fallthru
      _
    // Predicated region
    $region10: #{tpu_custom_call.1} parent=1 // pred_check
      _
    $region11: #{tpu_custom_call.1} parent=1 // pred_check_branch
      %49 = sbr.rel (0) target = $region13
    $region12: #{tpu_custom_call.1} parent=1 // pred_region
      %50 = dma.done [#allocation3], 512
    $region13: #{tpu_custom_call.1} parent=1 // pred_fallthru
      _
    // Predicated region
    $region14: #{tpu_custom_call.1} parent=1 // pred_check
      _
    $region15: #{tpu_custom_call.1} parent=1 // pred_check_branch
      %52 = sbr.rel (0) target = $region17
    $region16: #{tpu_custom_call.1} parent=1 // pred_region
      %53 = dma.done [#allocation6], 512
    $region17: #{tpu_custom_call.1} parent=1 // pred_fallthru
      _
    %s54 = sadd.s32 0, 0
    %p55 = scmp.lt.s32.totalorder %s54, 0
    %s56 = scalar_select %p55, %s54, 0
    %s57 = smul.u32 2, %s56
    %s58 = sadd.s32 0, 0
    %p59 = scmp.lt.s32.totalorder %s58, 0
    %s60 = scalar_select %p59, %s58, 0
    %s61 = smul.u32 2, %s60
    %p62 = scmp.eq.s32.totalorder 0, 0
    // Predicated region
    $region18: #{tpu_custom_call.1} parent=1 // pred_check
      %p63 = pneg %p62
    $region19: #{tpu_custom_call.1} parent=1 // pred_check_branch
      %65 = sbr.rel (%p63) target = $region21
    $region20: #{tpu_custom_call.1} parent=1 // pred_region
      %vm66 = vcmask 0
      %67 = vst.msk [vmem:[#allocation7] sm:$0x1] %vm66, 0.0
    $region21: #{tpu_custom_call.1} parent=1 // pred_fallthru
      _
    %s68 = sadd.s32 0, 0
    %s69 = smul.u32 %s68, 16
    %v70 = vlaneseq
    %v71 = vshrl.u32 %v70, 7
    %v72 = vadd.s32 %v71, 8
    %v73 = vstv %s69
    %v74 = vadd.s32 %v73, %v71
    %v75 = vadd.s32 %v73, %v72
    %vm76 = vcmp.lt.s32.totalorder %v74, 16
    %vm77 = vcmp.lt.s32.totalorder %v75, 16
    %v78 = vld [vmem:[#allocation2] sm:$0xff]
    %v79 = vld [vmem:[#allocation2 + $0x8] sm:$0xff]
    %v80 = vld [vmem:[#allocation2 + $0x10] sm:$0xff]
    %v81 = vld [vmem:[#allocation2 + $0x18] sm:$0xff]
    %v82 = vld [vmem:[#allocation5] sm:$0xff]
    %v83 = vld [vmem:[#allocation5 + $0x8] sm:$0xff]
    %v84 = vld [vmem:[#allocation5 + $0x10] sm:$0xff]
    %v85 = vld [vmem:[#allocation5 + $0x18] sm:$0xff]
    %v86 = vsub.f32 %v78, %v82
    %v87 = vsub.f32 %v79, %v83
    %v88 = vsub.f32 %v80, %v84
    %v89 = vsub.f32 %v81, %v85
    %v90 = vmul.f32 %v86, %v86
    %v91 = vmul.f32 %v87, %v87
    %v92 = vmul.f32 %v88, %v88
    %v93 = vmul.f32 %v89, %v89
    %v94 = vadd.f32 %v90, %v91
    %95 = vadd.xlane.f32.xlu0 %v94
    %v96 = vpop.xlane.xlu0 %95
    %v97 = vadd.f32 %v92, %v93
    %98 = vadd.xlane.f32.xlu0 %v97
    %v99 = vpop.xlane.xlu0 %98
    %v100 = vrsqrt.pop %v96
    %v101 = vmul.f32 %v96, %v100
    %vm102 = vcmp.eq.f32.partialorder %v96, inf
    %v103 = vsel %vm102, %v96, %v101
    %vm104 = vcmp.eq.f32.partialorder %v96, 0.0
    %v105 = vand.u32 %v96, 2147483648
    %v106 = vsel %vm104, %v105, %v103
    %v107 = vrsqrt.pop %v99
    %v108 = vmul.f32 %v99, %v107
    %vm109 = vcmp.eq.f32.partialorder %v99, inf
    %v110 = vsel %vm109, %v99, %v108
    %vm111 = vcmp.eq.f32.partialorder %v99, 0.0
    %v112 = vand.u32 %v99, 2147483648
    %v113 = vsel %vm111, %v112, %v110
    %v114 = vsel %vm76, %v106, 0.0
    %v115 = vsel %vm77, %v113, 0.0
    %v116 = vld [vmem:[#allocation7] sm:$0x1]
    %vm117 = vcmask 7168
    %v118 = vsel %vm117, %v114, 0.0
    %v119 = vsel %vm117, %v115, 0.0
    %v120 = vadd.f32 %v118, %v119
    %121 = vadd.xlane.f32.xlu0 %v120
    %v122 = vpop.xlane.xlu0 %121
    %v123 = vrot.slane %v122, 4
    %v124 = vadd.f32 %v122, %v123
    %v125 = vrot.slane %v124, 2
    %v126 = vadd.f32 %v124, %v125
    %v127 = vrot.slane %v126, 1
    %v128 = vadd.f32 %v126, %v127
    %s129 = vtos %v128
    %v130 = vstv %s129
    %v131 = vadd.f32 %v116, %v130
    %vm132 = vcmask 0
    %133 = vst.msk [vmem:[#allocation7] sm:$0x1] %vm132, %v131
    // Predicated region
    $region22: #{tpu_custom_call.1} parent=1 // pred_check
      _
    $region23: #{tpu_custom_call.1} parent=1 // pred_check_branch
      %135 = sbr.rel (0) target = $region25
    $region24: #{tpu_custom_call.1} parent=1 // pred_region
      %s137 = ssub.s32 16, 16
      %138 = vsyncadd [#allocation4], %s137
      %s140 = sshll.u32 [#allocation7], 4
      %s141 = int_to_ptr.vmem [resolvable:$true] %s140
      %143 = dma.vmem_to_hbm [thread:$0]  %s141, 16, %s2, [#allocation4]
    $region25: #{tpu_custom_call.1} parent=1 // pred_fallthru
      _
    // Predicated region
    $region26: #{tpu_custom_call.1} parent=1 // pred_check
      _
    $region27: #{tpu_custom_call.1} parent=1 // pred_check_branch
      %145 = sbr.rel (0) target = $region29
    $region28: #{tpu_custom_call.1} parent=1 // pred_region
      %146 = dma.done [#allocation4], 16
    $region29: #{tpu_custom_call.1} parent=1 // pred_fallthru
      _
    %147 = vsyncpa [#allocation3], 1
    %148 = vsyncpa [#allocation6], 1
    %149 = vsyncpa [#allocation4], 1

</llo_original>
